<compile_context>
chip_gen: v5e
topology: v5e:2x2
jax: 0.10.0
libtpu: 0.0.40
codegen_flags: <defaults>
</compile_context>

<pallas_src>
import jax
import jax.numpy as jnp
from jax.experimental import pallas as pl
from jax.experimental.pallas import tpu as pltpu


def _round_up(x, m):
    return (x + m - 1) // m * m


def _wce_kernel(s_ref, lbl_ref, counts_ref, cesum_ref):
    s = s_ref[...].astype(jnp.float32)            # (TB, Cp) logits tile
    lbl = lbl_ref[...]                            # (TB, 1) int32; -1 on padded rows
    tb, cp = s.shape

    class_ids = jax.lax.broadcasted_iota(jnp.int32, (tb, cp), 1)
    match = class_ids == lbl                      # (TB, Cp); all-False on padded rows
    match_f = match.astype(jnp.float32)

    # Per-row cross entropy: logsumexp(x) - x[label].
    s_max = jnp.max(s, axis=-1, keepdims=True)
    lse = jnp.log(jnp.sum(jnp.exp(s - s_max), axis=-1, keepdims=True)) + s_max
    picked = jnp.sum(jnp.where(match, s, 0.0), axis=-1, keepdims=True)
    ce_row = lse - picked                         # (TB, 1)

    # Per-class partial sums, folded down to 8 sublanes -> lane-dense (8, Cp) stores.
    g = tb // 8
    counts_ref[...] = jnp.sum(match_f.reshape(g, 8, cp), axis=0)
    cesum_ref[...] = jnp.sum((match_f * ce_row).reshape(g, 8, cp), axis=0)


def weighted_cross_entropy_loss(logits, targets, class_weights=None):
    """logits: (B, C) float; targets: (B,) int. Returns scalar float32 loss."""
    B, C = logits.shape
    c_pad = _round_up(C, 128)
    itemsize = jnp.dtype(logits.dtype).itemsize

    # Batch tile: keep 2 pipeline buffers of the logits tile well under the
    # default scoped VMEM budget -> same tiling works on v5e / v6e / v7x.
    budget = 8 * 1024 * 1024
    tb = max(8, min(budget // (2 * c_pad * itemsize), 512, _round_up(B, 8)))
    tb = int(tb) // 8 * 8
    b_pad = _round_up(B, tb)
    num_tiles = b_pad // tb

    # Pad: class axis with a large negative (ignored by softmax); padded batch
    # rows get label -1 (matches no class -> contributes nothing).
    logits_p = jnp.pad(logits, ((0, b_pad - B), (0, c_pad - C)),
                       constant_values=-1e30)
    labels_p = jnp.pad(targets.astype(jnp.int32), (0, b_pad - B),
                       constant_values=-1).reshape(b_pad, 1)

    counts_out, cesum_out = pl.pallas_call(
        _wce_kernel,
        out_shape=(
            jax.ShapeDtypeStruct((num_tiles * 8, c_pad), jnp.float32),
            jax.ShapeDtypeStruct((num_tiles * 8, c_pad), jnp.float32),
        ),
        grid_spec=pltpu.PrefetchScalarGridSpec(
            num_scalar_prefetch=0,
            grid=(num_tiles,),
            in_specs=[
                pl.BlockSpec((tb, c_pad), lambda i: (i, 0)),
                pl.BlockSpec((tb, 1), lambda i: (i, 0)),
            ],
            out_specs=[
                pl.BlockSpec((8, c_pad), lambda i: (i, 0)),
                pl.BlockSpec((8, c_pad), lambda i: (i, 0)),
            ],
        ),
        compiler_params=pltpu.CompilerParams(
            dimension_semantics=("parallel",)),
    )(logits_p, labels_p)

    # Tiny finalize in plain JAX: per-class weights + weighted mean.
    counts = jnp.sum(counts_out, axis=0)[:C]           # (C,) per-class frequency
    ce_sums = jnp.sum(cesum_out, axis=0)[:C]            # (C,) sum of CE per class
    if class_weights is None:
        total = jnp.sum(counts)                         # == B
        weights = total / (jnp.maximum(counts, 1.0) * C)
    else:
        weights = jnp.asarray(class_weights, jnp.float32)
    present = counts > 0
    num = jnp.sum(jnp.where(present, weights * ce_sums, 0.0))
    den = jnp.sum(jnp.where(present, weights * counts, 0.0))
    return num / den


def _reference_loss(logits, targets, num_classes):
    # Pure-JAX reference mirroring the PyTorch module (class_weights=None).
    logits = logits.astype(jnp.float32)
    counts = jnp.bincount(targets, length=num_classes).astype(jnp.float32)
    total = counts.sum()
    weights = total / (counts * num_classes)
    logp = jax.nn.log_softmax(logits, axis=-1)
    nll = -jnp.take_along_axis(logp, targets[:, None], axis=-1)[:, 0]
    w = weights[targets]
    return jnp.sum(w * nll) / jnp.sum(w)


if __name__ == "__main__":
    key = jax.random.PRNGKey(0)
    k1, k2 = jax.random.split(key)

    B, C = 16, 8
    logits = jax.random.normal(k1, (B, C), dtype=jnp.float32)
    targets = jax.random.randint(k2, (B,), 0, C, dtype=jnp.int32)
    # torch.bincount length is max(target)+1; make it equal num_classes so the
    # module's F.cross_entropy(weight=...) call is well-defined.
    targets = targets.at[0].set(C - 1)

    loss = weighted_cross_entropy_loss(logits, targets)
    loss = jax.block_until_ready(loss)

    ref = _reference_loss(logits, targets, C)
    assert jnp.allclose(loss, ref, rtol=1e-5, atol=1e-5), (loss, ref)

    print("KERNEL_OK")
</pallas_src>

<mosaic_0001>
module attributes {stable_mosaic.version = 11 : i64} {
  func.func @_wce_kernel(%arg0: i32, %arg1: memref<16x128xf32, #tpu.memory_space<vmem>>, %arg2: memref<16x1xi32, #tpu.memory_space<vmem>>, %arg3: memref<8x128xf32, #tpu.memory_space<vmem>>, %arg4: memref<8x128xf32, #tpu.memory_space<vmem>>) attributes {dimension_semantics = [#tpu.dimension_semantics<parallel>], iteration_bounds = array<i64: 1>, scalar_prefetch = 0 : i64, scratch_operands = 0 : i64, tpu.core_type = #tpu.core_type<tc>, window_params = [{transform_indices = @transform_0, window_bounds = array<i64: 16, 128>}, {transform_indices = @transform_1, window_bounds = array<i64: 16, 1>}, {transform_indices = @transform_2, window_bounds = array<i64: 8, 128>}, {transform_indices = @transform_3, window_bounds = array<i64: 8, 128>}]} {
    %c0 = arith.constant 0 : index
    %c0_0 = arith.constant 0 : index
    %0 = vector.load %arg1[%c0, %c0_0] : memref<16x128xf32, #tpu.memory_space<vmem>>, vector<16x128xf32>
    %c0_1 = arith.constant 0 : index
    %c0_2 = arith.constant 0 : index
    %1 = vector.load %arg2[%c0_1, %c0_2] : memref<16x1xi32, #tpu.memory_space<vmem>>, vector<16x1xi32>
    %2 = tpu.iota {dimensions = array<i32: 1>} : vector<16x128xi32>
    %3 = vector.broadcast %1 : vector<16x1xi32> to vector<16x128xi32>
    %4 = arith.cmpi eq, %2, %3 : vector<16x128xi32>
    %5 = arith.extui %4 : vector<16x128xi1> to vector<16x128xi32>
    %6 = arith.sitofp %5 : vector<16x128xi32> to vector<16x128xf32>
    %cst = arith.constant dense<0xFF800000> : vector<16xf32>
    %7 = vector.multi_reduction <maximumf>, %0, %cst [1] : vector<16x128xf32> to vector<16xf32>
    %8 = vector.shape_cast %7 : vector<16xf32> to vector<16x1xf32>
    %9 = vector.broadcast %8 : vector<16x1xf32> to vector<16x128xf32>
    %10 = arith.subf %0, %9 : vector<16x128xf32>
    %11 = math.exp %10 : vector<16x128xf32>
    %cst_3 = arith.constant dense<0.000000e+00> : vector<16xf32>
    %12 = vector.multi_reduction <add>, %11, %cst_3 [1] : vector<16x128xf32> to vector<16xf32>
    %13 = vector.shape_cast %12 : vector<16xf32> to vector<16x1xf32>
    %14 = math.log %13 : vector<16x1xf32>
    %15 = arith.addf %14, %8 : vector<16x1xf32>
    %cst_4 = arith.constant 0.000000e+00 : f32
    %16 = vector.broadcast %cst_4 : f32 to vector<16x128xf32>
    %17 = arith.select %4, %0, %16 : vector<16x128xi1>, vector<16x128xf32>
    %cst_5 = arith.constant dense<0.000000e+00> : vector<16xf32>
    %18 = vector.multi_reduction <add>, %17, %cst_5 [1] : vector<16x128xf32> to vector<16xf32>
    %19 = vector.shape_cast %18 : vector<16xf32> to vector<16x1xf32>
    %20 = arith.subf %15, %19 : vector<16x1xf32>
    %21 = vector.shape_cast %6 : vector<16x128xf32> to vector<2x8x128xf32>
    %cst_6 = arith.constant dense<0.000000e+00> : vector<8x128xf32>
    %22 = vector.multi_reduction <add>, %21, %cst_6 [0] : vector<2x8x128xf32> to vector<8x128xf32>
    %c0_7 = arith.constant 0 : index
    %c0_8 = arith.constant 0 : index
    %23 = vector.load %arg3[%c0_7, %c0_8] : memref<8x128xf32, #tpu.memory_space<vmem>>, vector<8x128xf32>
    tpu.vector_store %arg3[%c0_7, %c0_8], %22 {strides = array<i32>} : memref<8x128xf32, #tpu.memory_space<vmem>>, vector<8x128xf32>,
    %24 = vector.broadcast %20 : vector<16x1xf32> to vector<16x128xf32>
    %25 = arith.mulf %6, %24 : vector<16x128xf32>
    %26 = vector.shape_cast %25 : vector<16x128xf32> to vector<2x8x128xf32>
    %cst_9 = arith.constant dense<0.000000e+00> : vector<8x128xf32>
    %27 = vector.multi_reduction <add>, %26, %cst_9 [0] : vector<2x8x128xf32> to vector<8x128xf32>
    %c0_10 = arith.constant 0 : index
    %c0_11 = arith.constant 0 : index
    %28 = vector.load %arg4[%c0_10, %c0_11] : memref<8x128xf32, #tpu.memory_space<vmem>>, vector<8x128xf32>
    tpu.vector_store %arg4[%c0_10, %c0_11], %27 {strides = array<i32>} : memref<8x128xf32, #tpu.memory_space<vmem>>, vector<8x128xf32>,
    return
  }
  func.func @transform_0(%arg0: i32) -> (i32, i32) {
    %c0_i32 = arith.constant 0 : i32
    %c0_i32_0 = arith.constant 0 : i32
    return %arg0, %c0_i32 : i32, i32
  }
  func.func @transform_1(%arg0: i32) -> (i32, i32) {
    %c0_i32 = arith.constant 0 : i32
    %c0_i32_0 = arith.constant 0 : i32
    return %arg0, %c0_i32 : i32, i32
  }
  func.func @transform_2(%arg0: i32) -> (i32, i32) {
    %c0_i32 = arith.constant 0 : i32
    %c0_i32_0 = arith.constant 0 : i32
    return %arg0, %c0_i32 : i32, i32
  }
  func.func @transform_3(%arg0: i32) -> (i32, i32) {
    %c0_i32 = arith.constant 0 : i32
    %c0_i32_0 = arith.constant 0 : i32
    return %arg0, %c0_i32 : i32, i32
  }
}

</mosaic_0001>

<llo_original>
// kernel: tpu_custom_call.1
$region0: #{tpu_custom_call.1}
  #allocation0 [shape = 'u32[]', space=smem, size = 0x4, offset = 0x4, fixed_abs, tag = 'smem constant byte address 0x4 - core index']
  #allocation1 [shape = 'u32[72,128]{1,0:T(1,128)}', space=vmem, size = 0x9000, scoped, tag = 'internal scratch']
  %s0 = inlined_call_operand.vmem [shape: f32[16,128], index: 0, kind: input, shape index: {}]
  %s1 = inlined_call_operand.vmem [shape: s32[16,1], index: 1, kind: input, shape index: {}]
  %s2 = inlined_call_operand.hbm [shape: f32[8,128], index: 2, kind: output, shape index: {0}]
  %s3 = inlined_call_operand.hbm [shape: f32[8,128], index: 3, kind: output, shape index: {1}]
  %4 = xla_tuple %s2, %s3
  %s5 = sld [smem:[#allocation0]]
  $region26: #{tpu_custom_call.1} parent=0
    _
  %s7 = ssub.s32 1, %s5
  %s8 = scalar_select 0, %s7, %s5
  $region1: #{tpu_custom_call.1} parent=0
    #allocation2 [shape = 'u8[4096]{0}', space=vmem, size = 0x1000, scoped, tag = 'output window, operand 0, single buffered']
    #allocation3 [shape = 's32[1]{0}', space=sflag, size = 0x4, scoped, tag = 'scoped memory for tpu_custom_call.1']
    #allocation4 [shape = 'u8[4096]{0}', space=vmem, size = 0x1000, scoped, tag = 'output window, operand 1, single buffered']
    #allocation5 [shape = 's32[1]{0}', space=sflag, size = 0x4, scoped, tag = 'scoped memory for tpu_custom_call.1']
    %9 = vsyncpa [#allocation3], 0
    %10 = vsyncpa [#allocation5], 0
    // Predicated region
    $region2: #{tpu_custom_call.1} parent=1 // pred_check
      _
    $region3: #{tpu_custom_call.1} parent=1 // pred_check_branch
      %12 = sbr.rel (0) target = $region5
    $region4: #{tpu_custom_call.1} parent=1 // pred_region
      _
    $region5: #{tpu_custom_call.1} parent=1 // pred_fallthru
      _
    // Predicated region
    $region6: #{tpu_custom_call.1} parent=1 // pred_check
      _
    $region7: #{tpu_custom_call.1} parent=1 // pred_check_branch
      %14 = sbr.rel (0) target = $region9
    $region8: #{tpu_custom_call.1} parent=1 // pred_region
      _
    $region9: #{tpu_custom_call.1} parent=1 // pred_fallthru
      _
    %v15 = vld [vmem:[%s0] sm:$0xff]
    %v16 = vld [vmem:[%s0 + $0x8] sm:$0xff]
    %v17 = vld [vmem:[%s1] sm:$0xff]
    %v18 = vld [vmem:[%s1 + $0x8] sm:$0xff]
    %v19 = vlaneseq
    %v20 = vand.u32 %v19, 127
    %21 = vset.pattern.permute.xlu0 0
    %22 = vperm.xlu0 %21, %v17
    %v23 = vpop.permute.xlu0 %22
    %24 = vset.pattern.permute.xlu0 0
    %25 = vperm.xlu0 %24, %v18
    %v26 = vpop.permute.xlu0 %25
    %vm27 = vcmp.eq.s32.totalorder %v20, %v23
    %vm28 = vcmp.eq.s32.totalorder %v20, %v26
    %v29 = vsel %vm27, 1, 0
    %v30 = vsel %vm28, 1, 0
    %v31 = vcvt.s32.f32 %v29
    %v32 = vcvt.s32.f32 %v30
    %33 = vmax.xlane.f32.xlu0 %v15
    %v34 = vpop.xlane.xlu0 %33
    %35 = vmax.xlane.f32.xlu0 %v16
    %v36 = vpop.xlane.xlu0 %35
    %v37 = vsub.f32 %v15, %v34
    %v38 = vsub.f32 %v16, %v36
    %v39 = vmul.f32 %v37, 1.442695
    %v40 = vpow.pop %v39
    %v41 = vmul.f32 %v38, 1.442695
    %v42 = vpow.pop %v41
    %43 = vadd.xlane.f32.xlu0 %v40
    %v44 = vpop.xlane.xlu0 %43
    %45 = vadd.xlane.f32.xlu0 %v42
    %v46 = vpop.xlane.xlu0 %45
    %v47 = vlog2.pop %v44
    %v48 = vmul.f32 %v47, 0.6931472
    %v49 = vlog2.pop %v46
    %v50 = vmul.f32 %v49, 0.6931472
    %v51 = vadd.f32 %v48, %v34
    %v52 = vadd.f32 %v50, %v36
    %v53 = vsel %vm27, %v15, 0.0
    %v54 = vsel %vm28, %v16, 0.0
    %55 = vadd.xlane.f32.xlu0 %v53
    %v56 = vpop.xlane.xlu0 %55
    %57 = vadd.xlane.f32.xlu0 %v54
    %v58 = vpop.xlane.xlu0 %57
    %v59 = vsub.f32 %v51, %v56
    %v60 = vsub.f32 %v52, %v58
    %v61 = vadd.f32 %v31, %v32
    %62 = vst [vmem:[#allocation2] sm:$0xff] %v61
    %v63 = vmul.f32 %v31, %v59
    %v64 = vmul.f32 %v32, %v60
    %v65 = vadd.f32 %v63, %v64
    %66 = vst [vmem:[#allocation4] sm:$0xff] %v65
    // Predicated region
    $region10: #{tpu_custom_call.1} parent=1 // pred_check
      _
    $region11: #{tpu_custom_call.1} parent=1 // pred_check_branch
      %68 = sbr.rel (0) target = $region13
    $region12: #{tpu_custom_call.1} parent=1 // pred_region
      %70 = vsyncadd [#allocation3], 0
      %s72 = sshll.u32 [#allocation2], 4
      %s73 = int_to_ptr.vmem [resolvable:$true] %s72
      %s74 = sshll.u32 %s2, 4
      %s75 = int_to_ptr.hbm [resolvable:$true] %s74
      %77 = dma.vmem_to_hbm [thread:$0]  %s73, 128, %s75, [#allocation3]
    $region13: #{tpu_custom_call.1} parent=1 // pred_fallthru
      _
    // Predicated region
    $region14: #{tpu_custom_call.1} parent=1 // pred_check
      _
    $region15: #{tpu_custom_call.1} parent=1 // pred_check_branch
      %79 = sbr.rel (0) target = $region17
    $region16: #{tpu_custom_call.1} parent=1 // pred_region
      %81 = vsyncadd [#allocation5], 0
      %s83 = sshll.u32 [#allocation4], 4
      %s84 = int_to_ptr.vmem [resolvable:$true] %s83
      %s85 = sshll.u32 %s3, 4
      %s86 = int_to_ptr.hbm [resolvable:$true] %s85
      %88 = dma.vmem_to_hbm [thread:$0]  %s84, 128, %s86, [#allocation5]
    $region17: #{tpu_custom_call.1} parent=1 // pred_fallthru
      _
    // Predicated region
    $region18: #{tpu_custom_call.1} parent=1 // pred_check
      _
    $region19: #{tpu_custom_call.1} parent=1 // pred_check_branch
      %90 = sbr.rel (0) target = $region21
    $region20: #{tpu_custom_call.1} parent=1 // pred_region
      %92 = dma.done [#allocation3], 128
    $region21: #{tpu_custom_call.1} parent=1 // pred_fallthru
      _
    // Predicated region
    $region22: #{tpu_custom_call.1} parent=1 // pred_check
      _
    $region23: #{tpu_custom_call.1} parent=1 // pred_check_branch
      %94 = sbr.rel (0) target = $region25
    $region24: #{tpu_custom_call.1} parent=1 // pred_region
      %96 = dma.done [#allocation5], 128
    $region25: #{tpu_custom_call.1} parent=1 // pred_fallthru
      _
    %97 = vsyncpa [#allocation3], 1
    %98 = vsyncpa [#allocation5], 1

</llo_original>
